<compile_context>
chip_gen: v5e
topology: v5e:2x2
jax: 0.10.0
libtpu: 0.0.40
codegen_flags: <defaults>
</compile_context>

<pallas_src>
from functools import partial

import jax
import jax.numpy as jnp
from jax.experimental import pallas as pl
from jax.experimental.pallas import tpu as pltpu


def _round_up(x, m):
    return (x + m - 1) // m * m


def _chip_config():
    """Per-generation tuning: (core_axis, tile_budget_bytes, nt_cap, vmem_limit_bytes).

    v7x: 2 TensorCores/chip but only 64 MiB VMEM per core -> 2 core blocks,
         conservative tile budget and scoped-VMEM limit.
    v5e/v6e (and unknown/default): 1 TensorCore, 128 MiB VMEM -> single core
         block, larger tiles (fewer grid steps, longer DMA bursts).
    """
    kind = ""
    try:
        kind = jax.devices()[0].device_kind.lower()
    except Exception:  # defensive only; falls back to the conservative 1-TC config
        pass
    if "v7" in kind or "7x" in kind:
        return 2, 10 * 1024 * 1024, 1024, 40 * 1024 * 1024
    return 1, 18 * 1024 * 1024, 2048, 64 * 1024 * 1024


def _pick_n_tile(I, J, L, budget_bytes, nt_cap):
    """Largest multiple of 128 lanes whose per-step working set fits the budget."""
    Lp = _round_up(L, 8)  # sublane padding of every (L, NT) slab in VMEM/vregs
    per_lane = (
        2 * (I + J) * Lp * 4                        # double-buffered input blocks (f32 upper bound)
        + 4 * (4 * J * Lp + 3 * Lp + 4 * J + 8)     # f32 temporaries (pred-side + per-i loop)
    )
    nt = (budget_bytes // max(per_lane, 1)) // 128 * 128
    return int(max(128, min(nt, nt_cap)))


def _kl_loss_kernel(x_ref, p_ref, o_ref):
    # x_ref: (I, L, NT)  batch_x segments, N on the 128-wide lane axis
    # p_ref: (J, L, NT)  pred segments
    # o_ref: (1, 1, NT)  per-core, per-lane partial sums; VMEM-resident across the
    #        inner ("arbitrary") grid axis.  Reduced and divided by N outside.
    I = x_ref.shape[0]
    L = x_ref.shape[1]
    NT = x_ref.shape[2]

    # ---- pred-side softmax, shared across all x-segments i -----------------
    p = p_ref[...].astype(jnp.float32)                      # (J, L, NT)
    ps = p - jnp.max(p, axis=1, keepdims=True)              # (J, L, NT)
    e = jnp.exp(ps)                                         # (J, L, NT)
    se = jnp.sum(e, axis=1, keepdims=True)                  # (J, 1, NT)
    q = e * (1.0 / se)                                      # (J, L, NT)  reuse exp -> fewer EUP ops
    # log_q = ps - log(se);  q*log_q -> 0 when exp underflows (finite log_q, q == 0),
    # matching torch F.kl_div's xlogy convention.
    qlogq = jnp.sum(q * (ps - jnp.log(se)), axis=1)         # (J, NT)

    # ---- loop over x-segments: never materialize (I, J, NT) ----------------
    row_acc = jnp.zeros((1, NT), jnp.float32)
    for i in range(I):
        xi = x_ref[i].astype(jnp.float32)                   # (L, NT)
        xs = xi - jnp.max(xi, axis=0, keepdims=True)
        log_p_i = xs - jnp.log(jnp.sum(jnp.exp(xs), axis=0, keepdims=True))  # (L, NT)

        # cross[j, n] = sum_l log_p_i[l, n] * q[j, l, n]  (tiny L -> VPU, not MXU)
        cross = log_p_i[0:1, :] * q[:, 0, :]                # (J, NT)
        for l in range(1, L):
            cross = cross + log_p_i[l:l + 1, :] * q[:, l, :]

        kl_i = qlogq - cross                                # (J, NT)

        # fused softmax_j-weighted sum: sum_j w*kl = (sum_j e*kl) / (sum_j e)
        m = jnp.max(kl_i, axis=0, keepdims=True)            # (1, NT)
        ek = jnp.exp(kl_i - m)                              # (J, NT)
        num = jnp.sum(ek * kl_i, axis=0, keepdims=True)     # (1, NT)
        den = jnp.sum(ek, axis=0, keepdims=True)            # (1, NT)  >= 1, never zero
        row_acc = row_acc + num / den                       # exact divide

    @pl.when(pl.program_id(1) == 0)
    def _init():
        o_ref[...] = jnp.zeros_like(o_ref)

    o_ref[...] += row_acc[None, :, :]


@partial(jax.jit, static_argnums=(2,))
def kl_distance_loss(batch_x, pred, patch_len):
    """Pallas equivalent of KL_distance_loss.forward(batch_x, pred, patch_len)."""
    B, S, F_ = batch_x.shape
    _, P, _ = pred.shape
    L = patch_len
    I = S // L          # torch requires S % L == 0 (it index-errors otherwise)
    J = P // L
    N = B * F_          # rows after torch-style reshape(-1, seq_len)

    n_cores, budget, nt_cap, vmem_limit = _chip_config()

    # torch: reshape(-1, seq_len) then split(patch_len, dim=1)  ->  (N, I, L)
    x3 = jnp.reshape(batch_x, (N, I, L))
    p3 = jnp.reshape(pred, (N, J, L))

    n_tile = min(_pick_n_tile(I, J, L, budget, nt_cap),
                 max(128, _round_up(pl.cdiv(N, n_cores), 128)))
    tiles_per_core = pl.cdiv(pl.cdiv(N, n_tile), n_cores)
    n_pad = n_cores * tiles_per_core * n_tile

    # Lane-dense layout (I, L, N) / (J, L, N); zero-padded rows contribute exactly
    # 0 to the accumulated sum (uniform softmaxes -> kl == 0), so no masking needed.
    # TODO(synk): if the producer of batch_x/pred can emit this layout directly the
    # transpose+pad below disappears entirely; allow_input_fusion lets XLA fuse it
    # into the kernel's input DMA when it can.
    x_t = jnp.pad(jnp.transpose(x3, (1, 2, 0)), ((0, 0), (0, 0), (0, n_pad - N)))
    p_t = jnp.pad(jnp.transpose(p3, (1, 2, 0)), ((0, 0), (0, 0), (0, n_pad - N)))

    part = pl.pallas_call(
        _kl_loss_kernel,
        out_shape=jax.ShapeDtypeStruct((n_cores, 1, n_tile), jnp.float32),
        grid_spec=pltpu.PrefetchScalarGridSpec(
            num_scalar_prefetch=0,
            grid=(n_cores, tiles_per_core),
            in_specs=[
                pl.BlockSpec((I, L, n_tile),
                             lambda c, n: (0, 0, c * tiles_per_core + n)),
                pl.BlockSpec((J, L, n_tile),
                             lambda c, n: (0, 0, c * tiles_per_core + n)),
            ],
            out_specs=pl.BlockSpec((1, 1, n_tile), lambda c, n: (c, 0, 0)),
        ),
        compiler_params=pltpu.CompilerParams(
            dimension_semantics=("parallel", "arbitrary"),
            vmem_limit_bytes=vmem_limit,
            allow_input_fusion=[True, True],
        ),
    )(x_t, p_t)

    # loss = mean over the true N rows of sum_{i,j} w*kl
    return jnp.sum(part) / jnp.float32(N)


def _reference_loss(batch_x, pred, patch_len):
    """Pure-JAX reference mirroring the torch forward exactly."""
    B, S, F_ = batch_x.shape
    _, P, _ = pred.shape
    I, J, L = S // patch_len, P // patch_len, patch_len
    x = jnp.reshape(batch_x, (-1, I, L)).astype(jnp.float32)
    p = jnp.reshape(pred, (-1, J, L)).astype(jnp.float32)
    log_p = jax.nn.log_softmax(x, axis=-1)                    # (N, I, L)
    log_q = jax.nn.log_softmax(p, axis=-1)                    # (N, J, L)
    q = jnp.exp(log_q)
    kl = jnp.sum(q[:, None, :, :] * (log_q[:, None, :, :] - log_p[:, :, None, :]),
                 axis=-1)                                     # (N, I, J)
    w = jax.nn.softmax(kl, axis=-1)
    return jnp.mean(jnp.sum(w * kl, axis=(1, 2)))


if __name__ == "__main__":
    key = jax.random.PRNGKey(0)

    cases = [
        # (B, S, F, P, patch_len)
        (2, 16, 4, 8, 4),
        (3, 64, 8, 32, 8),
    ]
    for idx, (B, S, F_, P, L) in enumerate(cases):
        k1, k2 = jax.random.split(jax.random.fold_in(key, idx))
        batch_x = jax.random.normal(k1, (B, S, F_), dtype=jnp.float32)
        pred = jax.random.normal(k2, (B, P, F_), dtype=jnp.float32)

        loss = jax.block_until_ready(kl_distance_loss(batch_x, pred, L))
        ref = jax.block_until_ready(_reference_loss(batch_x, pred, L))
        assert jnp.allclose(loss, ref, rtol=1e-4, atol=1e-6), (idx, float(loss), float(ref))

    print("KERNEL_OK")
</pallas_src>

<mosaic_0001>
module attributes {stable_mosaic.version = 11 : i64} {
  func.func @_kl_loss_kernel(%arg0: i32, %arg1: i32, %arg2: memref<4x4x128xf32, #tpu.memory_space<vmem>>, %arg3: memref<2x4x128xf32, #tpu.memory_space<vmem>>, %arg4: memref<1x1x128xf32, #tpu.memory_space<vmem>>) attributes {dimension_semantics = [#tpu.dimension_semantics<parallel>, #tpu.dimension_semantics<arbitrary>], iteration_bounds = array<i64: 1, 1>, scalar_prefetch = 0 : i64, scratch_operands = 0 : i64, tpu.core_type = #tpu.core_type<tc>, window_params = [{transform_indices = @transform_0, window_bounds = array<i64: 4, 4, 128>}, {transform_indices = @transform_1, window_bounds = array<i64: 2, 4, 128>}, {transform_indices = @transform_2, window_bounds = array<i64: 1, 1, 128>}]} {
    %c0 = arith.constant 0 : index
    %c0_0 = arith.constant 0 : index
    %c0_1 = arith.constant 0 : index
    %0 = vector.load %arg3[%c0, %c0_0, %c0_1] : memref<2x4x128xf32, #tpu.memory_space<vmem>>, vector<2x4x128xf32>
    %cst = arith.constant dense<0xFF800000> : vector<2x128xf32>
    %1 = vector.multi_reduction <maximumf>, %0, %cst [1] : vector<2x4x128xf32> to vector<2x128xf32>
    %2 = vector.shape_cast %1 : vector<2x128xf32> to vector<2x1x128xf32>
    %3 = vector.broadcast %2 : vector<2x1x128xf32> to vector<2x4x128xf32>
    %4 = arith.subf %0, %3 : vector<2x4x128xf32>
    %5 = math.exp %4 : vector<2x4x128xf32>
    %cst_2 = arith.constant dense<0.000000e+00> : vector<2x128xf32>
    %6 = vector.multi_reduction <add>, %5, %cst_2 [1] : vector<2x4x128xf32> to vector<2x128xf32>
    %7 = vector.shape_cast %6 : vector<2x128xf32> to vector<2x1x128xf32>
    %cst_3 = arith.constant 1.000000e+00 : f32
    %8 = vector.broadcast %cst_3 : f32 to vector<2x1x128xf32>
    %9 = arith.divf %8, %7 : vector<2x1x128xf32>
    %10 = vector.broadcast %9 : vector<2x1x128xf32> to vector<2x4x128xf32>
    %11 = arith.mulf %5, %10 : vector<2x4x128xf32>
    %12 = math.log %7 : vector<2x1x128xf32>
    %13 = vector.broadcast %12 : vector<2x1x128xf32> to vector<2x4x128xf32>
    %14 = arith.subf %4, %13 : vector<2x4x128xf32>
    %15 = arith.mulf %11, %14 : vector<2x4x128xf32>
    %cst_4 = arith.constant dense<0.000000e+00> : vector<2x128xf32>
    %16 = vector.multi_reduction <add>, %15, %cst_4 [1] : vector<2x4x128xf32> to vector<2x128xf32>
    %cst_5 = arith.constant 0.000000e+00 : f32
    %17 = vector.broadcast %cst_5 : f32 to vector<1x128xf32>
    %c0_6 = arith.constant 0 : index
    %c0_7 = arith.constant 0 : index
    %c0_8 = arith.constant 0 : index
    %18 = vector.load %arg2[%c0_6, %c0_7, %c0_8] : memref<4x4x128xf32, #tpu.memory_space<vmem>>, vector<1x4x128xf32>
    %19 = vector.shape_cast %18 : vector<1x4x128xf32> to vector<4x128xf32>
    %cst_9 = arith.constant dense<0xFF800000> : vector<128xf32>
    %20 = vector.multi_reduction <maximumf>, %19, %cst_9 [0] : vector<4x128xf32> to vector<128xf32>
    %21 = vector.shape_cast %20 : vector<128xf32> to vector<1x128xf32>
    %22 = vector.broadcast %21 : vector<1x128xf32> to vector<4x128xf32>
    %23 = arith.subf %19, %22 : vector<4x128xf32>
    %24 = math.exp %23 : vector<4x128xf32>
    %cst_10 = arith.constant dense<0.000000e+00> : vector<128xf32>
    %25 = vector.multi_reduction <add>, %24, %cst_10 [0] : vector<4x128xf32> to vector<128xf32>
    %26 = vector.shape_cast %25 : vector<128xf32> to vector<1x128xf32>
    %27 = math.log %26 : vector<1x128xf32>
    %28 = vector.broadcast %27 : vector<1x128xf32> to vector<4x128xf32>
    %29 = arith.subf %23, %28 : vector<4x128xf32>
    %30 = vector.extract_strided_slice %29 {offsets = [0, 0], sizes = [1, 128], strides = [1, 1]} : vector<4x128xf32> to vector<1x128xf32>
    %31 = vector.extract_strided_slice %11 {offsets = [0, 0, 0], sizes = [2, 1, 128], strides = [1, 1, 1]} : vector<2x4x128xf32> to vector<2x1x128xf32>
    %32 = vector.shape_cast %31 : vector<2x1x128xf32> to vector<2x128xf32>
    %33 = vector.broadcast %30 : vector<1x128xf32> to vector<2x128xf32>
    %34 = arith.mulf %33, %32 : vector<2x128xf32>
    %35 = vector.extract_strided_slice %29 {offsets = [1, 0], sizes = [1, 128], strides = [1, 1]} : vector<4x128xf32> to vector<1x128xf32>
    %36 = vector.extract_strided_slice %11 {offsets = [0, 1, 0], sizes = [2, 1, 128], strides = [1, 1, 1]} : vector<2x4x128xf32> to vector<2x1x128xf32>
    %37 = vector.shape_cast %36 : vector<2x1x128xf32> to vector<2x128xf32>
    %38 = vector.broadcast %35 : vector<1x128xf32> to vector<2x128xf32>
    %39 = arith.mulf %38, %37 : vector<2x128xf32>
    %40 = arith.addf %34, %39 : vector<2x128xf32>
    %41 = vector.extract_strided_slice %29 {offsets = [2, 0], sizes = [1, 128], strides = [1, 1]} : vector<4x128xf32> to vector<1x128xf32>
    %42 = vector.extract_strided_slice %11 {offsets = [0, 2, 0], sizes = [2, 1, 128], strides = [1, 1, 1]} : vector<2x4x128xf32> to vector<2x1x128xf32>
    %43 = vector.shape_cast %42 : vector<2x1x128xf32> to vector<2x128xf32>
    %44 = vector.broadcast %41 : vector<1x128xf32> to vector<2x128xf32>
    %45 = arith.mulf %44, %43 : vector<2x128xf32>
    %46 = arith.addf %40, %45 : vector<2x128xf32>
    %47 = vector.extract_strided_slice %29 {offsets = [3, 0], sizes = [1, 128], strides = [1, 1]} : vector<4x128xf32> to vector<1x128xf32>
    %48 = vector.extract_strided_slice %11 {offsets = [0, 3, 0], sizes = [2, 1, 128], strides = [1, 1, 1]} : vector<2x4x128xf32> to vector<2x1x128xf32>
    %49 = vector.shape_cast %48 : vector<2x1x128xf32> to vector<2x128xf32>
    %50 = vector.broadcast %47 : vector<1x128xf32> to vector<2x128xf32>
    %51 = arith.mulf %50, %49 : vector<2x128xf32>
    %52 = arith.addf %46, %51 : vector<2x128xf32>
    %53 = arith.subf %16, %52 : vector<2x128xf32>
    %cst_11 = arith.constant dense<0xFF800000> : vector<128xf32>
    %54 = vector.multi_reduction <maximumf>, %53, %cst_11 [0] : vector<2x128xf32> to vector<128xf32>
    %55 = vector.shape_cast %54 : vector<128xf32> to vector<1x128xf32>
    %56 = vector.broadcast %55 : vector<1x128xf32> to vector<2x128xf32>
    %57 = arith.subf %53, %56 : vector<2x128xf32>
    %58 = math.exp %57 : vector<2x128xf32>
    %59 = arith.mulf %58, %53 : vector<2x128xf32>
    %cst_12 = arith.constant dense<0.000000e+00> : vector<128xf32>
    %60 = vector.multi_reduction <add>, %59, %cst_12 [0] : vector<2x128xf32> to vector<128xf32>
    %61 = vector.shape_cast %60 : vector<128xf32> to vector<1x128xf32>
    %cst_13 = arith.constant dense<0.000000e+00> : vector<128xf32>
    %62 = vector.multi_reduction <add>, %58, %cst_13 [0] : vector<2x128xf32> to vector<128xf32>
    %63 = vector.shape_cast %62 : vector<128xf32> to vector<1x128xf32>
    %64 = arith.divf %61, %63 : vector<1x128xf32>
    %65 = arith.addf %17, %64 : vector<1x128xf32>
    %c1 = arith.constant 1 : index
    %c0_14 = arith.constant 0 : index
    %c0_15 = arith.constant 0 : index
    %66 = vector.load %arg2[%c1, %c0_14, %c0_15] : memref<4x4x128xf32, #tpu.memory_space<vmem>>, vector<1x4x128xf32>
    %67 = vector.shape_cast %66 : vector<1x4x128xf32> to vector<4x128xf32>
    %cst_16 = arith.constant dense<0xFF800000> : vector<128xf32>
    %68 = vector.multi_reduction <maximumf>, %67, %cst_16 [0] : vector<4x128xf32> to vector<128xf32>
    %69 = vector.shape_cast %68 : vector<128xf32> to vector<1x128xf32>
    %70 = vector.broadcast %69 : vector<1x128xf32> to vector<4x128xf32>
    %71 = arith.subf %67, %70 : vector<4x128xf32>
    %72 = math.exp %71 : vector<4x128xf32>
    %cst_17 = arith.constant dense<0.000000e+00> : vector<128xf32>
    %73 = vector.multi_reduction <add>, %72, %cst_17 [0] : vector<4x128xf32> to vector<128xf32>
    %74 = vector.shape_cast %73 : vector<128xf32> to vector<1x128xf32>
    %75 = math.log %74 : vector<1x128xf32>
    %76 = vector.broadcast %75 : vector<1x128xf32> to vector<4x128xf32>
    %77 = arith.subf %71, %76 : vector<4x128xf32>
    %78 = vector.extract_strided_slice %77 {offsets = [0, 0], sizes = [1, 128], strides = [1, 1]} : vector<4x128xf32> to vector<1x128xf32>
    %79 = vector.extract_strided_slice %11 {offsets = [0, 0, 0], sizes = [2, 1, 128], strides = [1, 1, 1]} : vector<2x4x128xf32> to vector<2x1x128xf32>
    %80 = vector.shape_cast %79 : vector<2x1x128xf32> to vector<2x128xf32>
    %81 = vector.broadcast %78 : vector<1x128xf32> to vector<2x128xf32>
    %82 = arith.mulf %81, %80 : vector<2x128xf32>
    %83 = vector.extract_strided_slice %77 {offsets = [1, 0], sizes = [1, 128], strides = [1, 1]} : vector<4x128xf32> to vector<1x128xf32>
    %84 = vector.extract_strided_slice %11 {offsets = [0, 1, 0], sizes = [2, 1, 128], strides = [1, 1, 1]} : vector<2x4x128xf32> to vector<2x1x128xf32>
    %85 = vector.shape_cast %84 : vector<2x1x128xf32> to vector<2x128xf32>
    %86 = vector.broadcast %83 : vector<1x128xf32> to vector<2x128xf32>
    %87 = arith.mulf %86, %85 : vector<2x128xf32>
    %88 = arith.addf %82, %87 : vector<2x128xf32>
    %89 = vector.extract_strided_slice %77 {offsets = [2, 0], sizes = [1, 128], strides = [1, 1]} : vector<4x128xf32> to vector<1x128xf32>
    %90 = vector.extract_strided_slice %11 {offsets = [0, 2, 0], sizes = [2, 1, 128], strides = [1, 1, 1]} : vector<2x4x128xf32> to vector<2x1x128xf32>
    %91 = vector.shape_cast %90 : vector<2x1x128xf32> to vector<2x128xf32>
    %92 = vector.broadcast %89 : vector<1x128xf32> to vector<2x128xf32>
    %93 = arith.mulf %92, %91 : vector<2x128xf32>
    %94 = arith.addf %88, %93 : vector<2x128xf32>
    %95 = vector.extract_strided_slice %77 {offsets = [3, 0], sizes = [1, 128], strides = [1, 1]} : vector<4x128xf32> to vector<1x128xf32>
    %96 = vector.extract_strided_slice %11 {offsets = [0, 3, 0], sizes = [2, 1, 128], strides = [1, 1, 1]} : vector<2x4x128xf32> to vector<2x1x128xf32>
    %97 = vector.shape_cast %96 : vector<2x1x128xf32> to vector<2x128xf32>
    %98 = vector.broadcast %95 : vector<1x128xf32> to vector<2x128xf32>
    %99 = arith.mulf %98, %97 : vector<2x128xf32>
    %100 = arith.addf %94, %99 : vector<2x128xf32>
    %101 = arith.subf %16, %100 : vector<2x128xf32>
    %cst_18 = arith.constant dense<0xFF800000> : vector<128xf32>
    %102 = vector.multi_reduction <maximumf>, %101, %cst_18 [0] : vector<2x128xf32> to vector<128xf32>
    %103 = vector.shape_cast %102 : vector<128xf32> to vector<1x128xf32>
    %104 = vector.broadcast %103 : vector<1x128xf32> to vector<2x128xf32>
    %105 = arith.subf %101, %104 : vector<2x128xf32>
    %106 = math.exp %105 : vector<2x128xf32>
    %107 = arith.mulf %106, %101 : vector<2x128xf32>
    %cst_19 = arith.constant dense<0.000000e+00> : vector<128xf32>
    %108 = vector.multi_reduction <add>, %107, %cst_19 [0] : vector<2x128xf32> to vector<128xf32>
    %109 = vector.shape_cast %108 : vector<128xf32> to vector<1x128xf32>
    %cst_20 = arith.constant dense<0.000000e+00> : vector<128xf32>
    %110 = vector.multi_reduction <add>, %106, %cst_20 [0] : vector<2x128xf32> to vector<128xf32>
    %111 = vector.shape_cast %110 : vector<128xf32> to vector<1x128xf32>
    %112 = arith.divf %109, %111 : vector<1x128xf32>
    %113 = arith.addf %65, %112 : vector<1x128xf32>
    %c2 = arith.constant 2 : index
    %c0_21 = arith.constant 0 : index
    %c0_22 = arith.constant 0 : index
    %114 = vector.load %arg2[%c2, %c0_21, %c0_22] : memref<4x4x128xf32, #tpu.memory_space<vmem>>, vector<1x4x128xf32>
    %115 = vector.shape_cast %114 : vector<1x4x128xf32> to vector<4x128xf32>
    %cst_23 = arith.constant dense<0xFF800000> : vector<128xf32>
    %116 = vector.multi_reduction <maximumf>, %115, %cst_23 [0] : vector<4x128xf32> to vector<128xf32>
    %117 = vector.shape_cast %116 : vector<128xf32> to vector<1x128xf32>
    %118 = vector.broadcast %117 : vector<1x128xf32> to vector<4x128xf32>
    %119 = arith.subf %115, %118 : vector<4x128xf32>
    %120 = math.exp %119 : vector<4x128xf32>
    %cst_24 = arith.constant dense<0.000000e+00> : vector<128xf32>
    %121 = vector.multi_reduction <add>, %120, %cst_24 [0] : vector<4x128xf32> to vector<128xf32>
    %122 = vector.shape_cast %121 : vector<128xf32> to vector<1x128xf32>
    %123 = math.log %122 : vector<1x128xf32>
    %124 = vector.broadcast %123 : vector<1x128xf32> to vector<4x128xf32>
    %125 = arith.subf %119, %124 : vector<4x128xf32>
    %126 = vector.extract_strided_slice %125 {offsets = [0, 0], sizes = [1, 128], strides = [1, 1]} : vector<4x128xf32> to vector<1x128xf32>
    %127 = vector.extract_strided_slice %11 {offsets = [0, 0, 0], sizes = [2, 1, 128], strides = [1, 1, 1]} : vector<2x4x128xf32> to vector<2x1x128xf32>
    %128 = vector.shape_cast %127 : vector<2x1x128xf32> to vector<2x128xf32>
    %129 = vector.broadcast %126 : vector<1x128xf32> to vector<2x128xf32>
    %130 = arith.mulf %129, %128 : vector<2x128xf32>
    %131 = vector.extract_strided_slice %125 {offsets = [1, 0], sizes = [1, 128], strides = [1, 1]} : vector<4x128xf32> to vector<1x128xf32>
    %132 = vector.extract_strided_slice %11 {offsets = [0, 1, 0], sizes = [2, 1, 128], strides = [1, 1, 1]} : vector<2x4x128xf32> to vector<2x1x128xf32>
    %133 = vector.shape_cast %132 : vector<2x1x128xf32> to vector<2x128xf32>
    %134 = vector.broadcast %131 : vector<1x128xf32> to vector<2x128xf32>
    %135 = arith.mulf %134, %133 : vector<2x128xf32>
    %136 = arith.addf %130, %135 : vector<2x128xf32>
    %137 = vector.extract_strided_slice %125 {offsets = [2, 0], sizes = [1, 128], strides = [1, 1]} : vector<4x128xf32> to vector<1x128xf32>
    %138 = vector.extract_strided_slice %11 {offsets = [0, 2, 0], sizes = [2, 1, 128], strides = [1, 1, 1]} : vector<2x4x128xf32> to vector<2x1x128xf32>
    %139 = vector.shape_cast %138 : vector<2x1x128xf32> to vector<2x128xf32>
    %140 = vector.broadcast %137 : vector<1x128xf32> to vector<2x128xf32>
    %141 = arith.mulf %140, %139 : vector<2x128xf32>
    %142 = arith.addf %136, %141 : vector<2x128xf32>
    %143 = vector.extract_strided_slice %125 {offsets = [3, 0], sizes = [1, 128], strides = [1, 1]} : vector<4x128xf32> to vector<1x128xf32>
    %144 = vector.extract_strided_slice %11 {offsets = [0, 3, 0], sizes = [2, 1, 128], strides = [1, 1, 1]} : vector<2x4x128xf32> to vector<2x1x128xf32>
    %145 = vector.shape_cast %144 : vector<2x1x128xf32> to vector<2x128xf32>
    %146 = vector.broadcast %143 : vector<1x128xf32> to vector<2x128xf32>
    %147 = arith.mulf %146, %145 : vector<2x128xf32>
    %148 = arith.addf %142, %147 : vector<2x128xf32>
    %149 = arith.subf %16, %148 : vector<2x128xf32>
    %cst_25 = arith.constant dense<0xFF800000> : vector<128xf32>
    %150 = vector.multi_reduction <maximumf>, %149, %cst_25 [0] : vector<2x128xf32> to vector<128xf32>
    %151 = vector.shape_cast %150 : vector<128xf32> to vector<1x128xf32>
    %152 = vector.broadcast %151 : vector<1x128xf32> to vector<2x128xf32>
    %153 = arith.subf %149, %152 : vector<2x128xf32>
    %154 = math.exp %153 : vector<2x128xf32>
    %155 = arith.mulf %154, %149 : vector<2x128xf32>
    %cst_26 = arith.constant dense<0.000000e+00> : vector<128xf32>
    %156 = vector.multi_reduction <add>, %155, %cst_26 [0] : vector<2x128xf32> to vector<128xf32>
    %157 = vector.shape_cast %156 : vector<128xf32> to vector<1x128xf32>
    %cst_27 = arith.constant dense<0.000000e+00> : vector<128xf32>
    %158 = vector.multi_reduction <add>, %154, %cst_27 [0] : vector<2x128xf32> to vector<128xf32>
    %159 = vector.shape_cast %158 : vector<128xf32> to vector<1x128xf32>
    %160 = arith.divf %157, %159 : vector<1x128xf32>
    %161 = arith.addf %113, %160 : vector<1x128xf32>
    %c3 = arith.constant 3 : index
    %c0_28 = arith.constant 0 : index
    %c0_29 = arith.constant 0 : index
    %162 = vector.load %arg2[%c3, %c0_28, %c0_29] : memref<4x4x128xf32, #tpu.memory_space<vmem>>, vector<1x4x128xf32>
    %163 = vector.shape_cast %162 : vector<1x4x128xf32> to vector<4x128xf32>
    %cst_30 = arith.constant dense<0xFF800000> : vector<128xf32>
    %164 = vector.multi_reduction <maximumf>, %163, %cst_30 [0] : vector<4x128xf32> to vector<128xf32>
    %165 = vector.shape_cast %164 : vector<128xf32> to vector<1x128xf32>
    %166 = vector.broadcast %165 : vector<1x128xf32> to vector<4x128xf32>
    %167 = arith.subf %163, %166 : vector<4x128xf32>
    %168 = math.exp %167 : vector<4x128xf32>
    %cst_31 = arith.constant dense<0.000000e+00> : vector<128xf32>
    %169 = vector.multi_reduction <add>, %168, %cst_31 [0] : vector<4x128xf32> to vector<128xf32>
    %170 = vector.shape_cast %169 : vector<128xf32> to vector<1x128xf32>
    %171 = math.log %170 : vector<1x128xf32>
    %172 = vector.broadcast %171 : vector<1x128xf32> to vector<4x128xf32>
    %173 = arith.subf %167, %172 : vector<4x128xf32>
    %174 = vector.extract_strided_slice %173 {offsets = [0, 0], sizes = [1, 128], strides = [1, 1]} : vector<4x128xf32> to vector<1x128xf32>
    %175 = vector.extract_strided_slice %11 {offsets = [0, 0, 0], sizes = [2, 1, 128], strides = [1, 1, 1]} : vector<2x4x128xf32> to vector<2x1x128xf32>
    %176 = vector.shape_cast %175 : vector<2x1x128xf32> to vector<2x128xf32>
    %177 = vector.broadcast %174 : vector<1x128xf32> to vector<2x128xf32>
    %178 = arith.mulf %177, %176 : vector<2x128xf32>
    %179 = vector.extract_strided_slice %173 {offsets = [1, 0], sizes = [1, 128], strides = [1, 1]} : vector<4x128xf32> to vector<1x128xf32>
    %180 = vector.extract_strided_slice %11 {offsets = [0, 1, 0], sizes = [2, 1, 128], strides = [1, 1, 1]} : vector<2x4x128xf32> to vector<2x1x128xf32>
    %181 = vector.shape_cast %180 : vector<2x1x128xf32> to vector<2x128xf32>
    %182 = vector.broadcast %179 : vector<1x128xf32> to vector<2x128xf32>
    %183 = arith.mulf %182, %181 : vector<2x128xf32>
    %184 = arith.addf %178, %183 : vector<2x128xf32>
    %185 = vector.extract_strided_slice %173 {offsets = [2, 0], sizes = [1, 128], strides = [1, 1]} : vector<4x128xf32> to vector<1x128xf32>
    %186 = vector.extract_strided_slice %11 {offsets = [0, 2, 0], sizes = [2, 1, 128], strides = [1, 1, 1]} : vector<2x4x128xf32> to vector<2x1x128xf32>
    %187 = vector.shape_cast %186 : vector<2x1x128xf32> to vector<2x128xf32>
    %188 = vector.broadcast %185 : vector<1x128xf32> to vector<2x128xf32>
    %189 = arith.mulf %188, %187 : vector<2x128xf32>
    %190 = arith.addf %184, %189 : vector<2x128xf32>
    %191 = vector.extract_strided_slice %173 {offsets = [3, 0], sizes = [1, 128], strides = [1, 1]} : vector<4x128xf32> to vector<1x128xf32>
    %192 = vector.extract_strided_slice %11 {offsets = [0, 3, 0], sizes = [2, 1, 128], strides = [1, 1, 1]} : vector<2x4x128xf32> to vector<2x1x128xf32>
    %193 = vector.shape_cast %192 : vector<2x1x128xf32> to vector<2x128xf32>
    %194 = vector.broadcast %191 : vector<1x128xf32> to vector<2x128xf32>
    %195 = arith.mulf %194, %193 : vector<2x128xf32>
    %196 = arith.addf %190, %195 : vector<2x128xf32>
    %197 = arith.subf %16, %196 : vector<2x128xf32>
    %cst_32 = arith.constant dense<0xFF800000> : vector<128xf32>
    %198 = vector.multi_reduction <maximumf>, %197, %cst_32 [0] : vector<2x128xf32> to vector<128xf32>
    %199 = vector.shape_cast %198 : vector<128xf32> to vector<1x128xf32>
    %200 = vector.broadcast %199 : vector<1x128xf32> to vector<2x128xf32>
    %201 = arith.subf %197, %200 : vector<2x128xf32>
    %202 = math.exp %201 : vector<2x128xf32>
    %203 = arith.mulf %202, %197 : vector<2x128xf32>
    %cst_33 = arith.constant dense<0.000000e+00> : vector<128xf32>
    %204 = vector.multi_reduction <add>, %203, %cst_33 [0] : vector<2x128xf32> to vector<128xf32>
    %205 = vector.shape_cast %204 : vector<128xf32> to vector<1x128xf32>
    %cst_34 = arith.constant dense<0.000000e+00> : vector<128xf32>
    %206 = vector.multi_reduction <add>, %202, %cst_34 [0] : vector<2x128xf32> to vector<128xf32>
    %207 = vector.shape_cast %206 : vector<128xf32> to vector<1x128xf32>
    %208 = arith.divf %205, %207 : vector<1x128xf32>
    %209 = arith.addf %161, %208 : vector<1x128xf32>
    %c0_i32 = arith.constant 0 : i32
    %210 = arith.cmpi eq, %arg1, %c0_i32 : i32
    %211 = arith.extui %210 : i1 to i32
    %c0_i32_35 = arith.constant 0 : i32
    %212 = arith.cmpi ne, %211, %c0_i32_35 : i32
    scf.if %212 {
      %cst_42 = arith.constant 0.000000e+00 : f32
      %217 = vector.broadcast %cst_42 : f32 to vector<1x1x128xf32>
      %c0_43 = arith.constant 0 : index
      %c0_44 = arith.constant 0 : index
      %c0_45 = arith.constant 0 : index
      %218 = vector.load %arg4[%c0_43, %c0_44, %c0_45] : memref<1x1x128xf32, #tpu.memory_space<vmem>>, vector<1x1x128xf32>
      tpu.vector_store %arg4[%c0_43, %c0_44, %c0_45], %217 {strides = array<i32>} : memref<1x1x128xf32, #tpu.memory_space<vmem>>, vector<1x1x128xf32>,
    } else {
    }
    %c0_36 = arith.constant 0 : index
    %c0_37 = arith.constant 0 : index
    %c0_38 = arith.constant 0 : index
    %213 = vector.load %arg4[%c0_36, %c0_37, %c0_38] : memref<1x1x128xf32, #tpu.memory_space<vmem>>, vector<1x1x128xf32>
    %214 = vector.shape_cast %209 : vector<1x128xf32> to vector<1x1x128xf32>
    %215 = arith.addf %213, %214 : vector<1x1x128xf32>
    %c0_39 = arith.constant 0 : index
    %c0_40 = arith.constant 0 : index
    %c0_41 = arith.constant 0 : index
    %216 = vector.load %arg4[%c0_39, %c0_40, %c0_41] : memref<1x1x128xf32, #tpu.memory_space<vmem>>, vector<1x1x128xf32>
    tpu.vector_store %arg4[%c0_39, %c0_40, %c0_41], %215 {strides = array<i32>} : memref<1x1x128xf32, #tpu.memory_space<vmem>>, vector<1x1x128xf32>,
    return
  }
  func.func @transform_0(%arg0: i32, %arg1: i32) -> (i32, i32, i32) {
    %c1_i32 = arith.constant 1 : i32
    %0 = arith.muli %arg0, %c1_i32 : i32
    %1 = arith.addi %0, %arg1 : i32
    %c0_i32 = arith.constant 0 : i32
    %c0_i32_0 = arith.constant 0 : i32
    %c0_i32_1 = arith.constant 0 : i32
    return %c0_i32, %c0_i32_0, %1 : i32, i32, i32
  }
  func.func @transform_1(%arg0: i32, %arg1: i32) -> (i32, i32, i32) {
    %c1_i32 = arith.constant 1 : i32
    %0 = arith.muli %arg0, %c1_i32 : i32
    %1 = arith.addi %0, %arg1 : i32
    %c0_i32 = arith.constant 0 : i32
    %c0_i32_0 = arith.constant 0 : i32
    %c0_i32_1 = arith.constant 0 : i32
    return %c0_i32, %c0_i32_0, %1 : i32, i32, i32
  }
  func.func @transform_2(%arg0: i32, %arg1: i32) -> (i32, i32, i32) {
    %c0_i32 = arith.constant 0 : i32
    %c0_i32_0 = arith.constant 0 : i32
    %c0_i32_1 = arith.constant 0 : i32
    return %arg0, %c0_i32, %c0_i32_0 : i32, i32, i32
  }
}

</mosaic_0001>

<llo_original>
// kernel: kl_distance_loss.2
$region0: #{kl_distance_loss.2}
  #allocation0 [shape = 'u32[]', space=smem, size = 0x4, offset = 0x4, fixed_abs, tag = 'smem constant byte address 0x4 - core index']
  #allocation1 [shape = 'u32[72,128]{1,0:T(1,128)}', space=vmem, size = 0x9000, scoped, tag = 'internal scratch']
  #allocation2 [shape = 'u32[2048]{0}', space=vmem, size = 0x2000, scoped, tag = 'scoped memory for kl_distance_loss.2']
  #allocation3 [shape = 'u32[2048]{0}', space=vmem, size = 0x2000, scoped, tag = 'scoped memory for kl_distance_loss.2']
  #allocation4 [shape = 'u32[2048]{0}', space=vmem, size = 0x2000, scoped, tag = 'scoped memory for kl_distance_loss.2']
  #allocation5 [shape = 'u32[2048]{0}', space=vmem, size = 0x2000, scoped, tag = 'scoped memory for kl_distance_loss.2']
  #allocation6 [shape = 'u32[2048]{0}', space=vmem, size = 0x2000, scoped, tag = 'scoped memory for kl_distance_loss.2']
  #allocation7 [shape = 'u32[2048]{0}', space=vmem, size = 0x2000, scoped, tag = 'scoped memory for kl_distance_loss.2']
  #allocation8 [shape = 'u32[2048]{0}', space=vmem, size = 0x2000, scoped, tag = 'scoped memory for kl_distance_loss.2']
  #allocation9 [shape = 'u32[2048]{0}', space=vmem, size = 0x2000, scoped, tag = 'scoped memory for kl_distance_loss.2']
  #allocation10 [shape = 'u32[2048]{0}', space=vmem, size = 0x2000, scoped, tag = 'scoped memory for kl_distance_loss.2']
  #allocation11 [shape = 'u32[2048]{0}', space=vmem, size = 0x2000, scoped, tag = 'scoped memory for kl_distance_loss.2']
  %s0 = inlined_call_operand.vmem [shape: f32[4,4,8], index: 0, kind: input, shape index: {}]
  %s1 = inlined_call_operand.<no memory space> [shape: f32[], index: 1, kind: input, shape index: {}]
  %s2 = inlined_call_operand.vmem [shape: f32[2,4,8], index: 2, kind: input, shape index: {}]
  %s3 = inlined_call_operand.vmem [shape: f32[1,1,128], index: 3, kind: output, shape index: {}]
  %s4 = sld [smem:[#allocation0]]
  $region22: #{kl_distance_loss.2} parent=0
    _
  %s6 = ssub.s32 1, %s4
  %s7 = scalar_select 0, %s6, %s4
  %v8 = vstv %s1
  %v9 = vstv %s1
  $region1: #{kl_distance_loss.2} parent=0
    #allocation12 [shape = 'u8[8192]{0}', space=vmem, size = 0x2000, dematerialized = true, scoped, tag = 'FusionAdapter Buffer %fusion.1 = f32[4,4,128]{2,1,0:T(4,128)} fusion(%param_0.3, %param_1.3), kind=kLoop, calls=%fused_computation.1.clone, metadata={op_name="jit(kl_distance_loss)/jit(_pad)/pad" stack_frame_id=11}']
    #allocation13 [shape = 'u8[4096]{0}', space=vmem, size = 0x1000, dematerialized = true, scoped, tag = 'FusionAdapter Buffer %fusion.2 = f32[2,4,128]{2,1,0:T(4,128)} fusion(%param_2.1, %param_1.3), kind=kLoop, calls=%fused_computation.2.clone, metadata={op_name="jit(kl_distance_loss)/jit(_pad)/pad" stack_frame_id=13}']
    // Predicated region
    $region2: #{kl_distance_loss.2} parent=1 // pred_check
      _
    $region3: #{kl_distance_loss.2} parent=1 // pred_check_branch
      %11 = sbr.rel (0) target = $region5
    $region4: #{kl_distance_loss.2} parent=1 // pred_region
      %s12 = sadd.s32 0, 0
      %s13 = ssub.s32 1, %s12
      %s14 = smul.u32 16, %s13
      %p15 = scmp.lt.s32.totalorder %s12, 0
      %s16 = scalar_select %p15, %s12, 0
      %s17 = smul.addr %s16, 4
      %s18 = scalar_lea.vmem %s0, %s17
      %s19 = sadd.s32 0, 0
      %s20 = ssub.s32 1, %s19
      %s21 = smul.u32 16, %s20
    $region5: #{kl_distance_loss.2} parent=1 // pred_fallthru
      _
    // Predicated region
    $region6: #{kl_distance_loss.2} parent=1 // pred_check
      _
    $region7: #{kl_distance_loss.2} parent=1 // pred_check_branch
      %23 = sbr.rel (0) target = $region9
    $region8: #{kl_distance_loss.2} parent=1 // pred_region
      %s24 = sadd.s32 0, 0
      %s25 = ssub.s32 1, %s24
      %s26 = smul.u32 8, %s25
      %p27 = scmp.lt.s32.totalorder %s24, 0
      %s28 = scalar_select %p27, %s24, 0
      %s29 = smul.addr %s28, 4
      %s30 = scalar_lea.vmem %s2, %s29
      %s31 = sadd.s32 0, 0
      %s32 = ssub.s32 1, %s31
      %s33 = smul.u32 8, %s32
    $region9: #{kl_distance_loss.2} parent=1 // pred_fallthru
      _
    %s34 = sadd.s32 0, 0
    %s35 = ssub.s32 1, %s34
    %s36 = smul.u32 16, %s35
    %p37 = scmp.lt.s32.totalorder %s34, 0
    %s38 = scalar_select %p37, %s34, 0
    %s39 = smul.addr %s38, 4
    %s40 = scalar_lea.vmem %s0, %s39
    %s41 = sadd.s32 0, 0
    %s42 = ssub.s32 1, %s41
    %s43 = smul.u32 8, %s42
    %p44 = scmp.lt.s32.totalorder %s41, 0
    %s45 = scalar_select %p44, %s41, 0
    %s46 = smul.addr %s45, 4
    %s47 = scalar_lea.vmem %s2, %s46
    %s48 = sadd.s32 0, 0
    %s49 = ssub.s32 1, %s48
    %s50 = smul.u32 16, %s49
    %p51 = scmp.lt.s32.totalorder %s48, 0
    %s52 = scalar_select %p51, %s48, 0
    %s53 = smul.addr %s52, 4
    %s54 = scalar_lea.vmem %s0, %s53
    %s55 = sadd.s32 0, 0
    %s56 = ssub.s32 1, %s55
    %s57 = smul.u32 16, %s56
    %s58 = sadd.s32 0, 0
    %s59 = ssub.s32 1, %s58
    %s60 = smul.u32 8, %s59
    %p61 = scmp.lt.s32.totalorder %s58, 0
    %s62 = scalar_select %p61, %s58, 0
    %s63 = smul.addr %s62, 4
    %s64 = scalar_lea.vmem %s2, %s63
    %s65 = sadd.s32 0, 0
    %s66 = ssub.s32 1, %s65
    %s67 = smul.u32 8, %s66
    %s68 = ssub.s32 0, %s55
    %p69 = scmp.lt.s32.totalorder %s68, 0
    %s70 = scalar_select %p69, 0, 255
    %s71 = sand.u32 15, %s70
    %s72 = sand.u32 15, %s71
    %v73 = vld [vmem:[%s54] sm:%s72]
    %s74 = ssub.s32 0, %s55
    %v75 = vstv %s74
    %vm76 = vcmp.lt.s32.totalorder %v75, 0
    %v77 = vsel %vm76, %v8, %v73
    %v78 = vlaneseq
    %v79 = vshrl.u32 %v78, 7
    %vm81 = vcmp.lt.s32.totalorder %v79, 4
    %v82 = vsel %vm81, %v77, %v8
    %s83 = smul.addr %s55, 128
    %v84 = vlaneseq
    %v85 = vand.u32 %v84, 127
    %v86 = vstv %s83
    %v87 = vadd.s32 %v85, %v86
    %vm88 = vcmp.lt.s32.totalorder %v87, 8
    %v89 = vsel %vm88, %v82, %v8
    %s91 = ssub.s32 16, 1
    %92 = vst [vmem:[#allocation12] sm:%s91] %v89
    %s93 = scalar_lea.vmem %s54, 4
    %s94 = ssub.s32 0, %s55
    %p95 = scmp.lt.s32.totalorder %s94, 0
    %s96 = scalar_select %p95, 0, 255
    %s97 = sand.u32 15, %s96
    %s98 = sand.u32 15, %s97
    %v99 = vld [vmem:[%s93] sm:%s98]
    %s100 = ssub.s32 0, %s55
    %v101 = vstv %s100
    %vm102 = vcmp.lt.s32.totalorder %v101, 0
    %v103 = vsel %vm102, %v8, %v99
    %v104 = vlaneseq
    %v105 = vshrl.u32 %v104, 7
    %vm107 = vcmp.lt.s32.totalorder %v105, 4
    %v108 = vsel %vm107, %v103, %v8
    %s109 = smul.addr %s55, 128
    %v110 = vlaneseq
    %v111 = vand.u32 %v110, 127
    %v112 = vstv %s109
    %v113 = vadd.s32 %v111, %v112
    %vm114 = vcmp.lt.s32.totalorder %v113, 8
    %v115 = vsel %vm114, %v108, %v8
    %s116 = scalar_lea.vmem [#allocation12], 4
    %s118 = ssub.s32 16, 1
    %119 = vst [vmem:[%s116] sm:%s118] %v115
    %s120 = scalar_lea.vmem %s54, 8
    %s121 = ssub.s32 0, %s55
    %p122 = scmp.lt.s32.totalorder %s121, 0
    %s123 = scalar_select %p122, 0, 255
    %s124 = sand.u32 15, %s123
    %s125 = sand.u32 15, %s124
    %v126 = vld [vmem:[%s120] sm:%s125]
    %s127 = ssub.s32 0, %s55
    %v128 = vstv %s127
    %vm129 = vcmp.lt.s32.totalorder %v128, 0
    %v130 = vsel %vm129, %v8, %v126
    %v131 = vlaneseq
    %v132 = vshrl.u32 %v131, 7
    %vm134 = vcmp.lt.s32.totalorder %v132, 4
    %v135 = vsel %vm134, %v130, %v8
    %s136 = smul.addr %s55, 128
    %v137 = vlaneseq
    %v138 = vand.u32 %v137, 127
    %v139 = vstv %s136
    %v140 = vadd.s32 %v138, %v139
    %vm141 = vcmp.lt.s32.totalorder %v140, 8
    %v142 = vsel %vm141, %v135, %v8
    %s143 = scalar_lea.vmem [#allocation12], 8
    %s145 = ssub.s32 16, 1
    %146 = vst [vmem:[%s143] sm:%s145] %v142
    %s147 = scalar_lea.vmem %s54, 12
    %s148 = ssub.s32 0, %s55
    %p149 = scmp.lt.s32.totalorder %s148, 0
    %s150 = scalar_select %p149, 0, 255
    %s151 = sand.u32 15, %s150
    %s152 = sand.u32 15, %s151
    %v153 = vld [vmem:[%s147] sm:%s152]
    %s154 = ssub.s32 0, %s55
    %v155 = vstv %s154
    %vm156 = vcmp.lt.s32.totalorder %v155, 0
    %v157 = vsel %vm156, %v8, %v153
    %v158 = vlaneseq
    %v159 = vshrl.u32 %v158, 7
    %vm161 = vcmp.lt.s32.totalorder %v159, 4
    %v162 = vsel %vm161, %v157, %v8
    %s163 = smul.addr %s55, 128
    %v164 = vlaneseq
    %v165 = vand.u32 %v164, 127
    %v166 = vstv %s163
    %v167 = vadd.s32 %v165, %v166
    %vm168 = vcmp.lt.s32.totalorder %v167, 8
    %v169 = vsel %vm168, %v162, %v8
    %s170 = scalar_lea.vmem [#allocation12], 12
    %s172 = ssub.s32 16, 1
    %173 = vst [vmem:[%s170] sm:%s172] %v169
    %s174 = ssub.s32 0, %s65
    %p175 = scmp.lt.s32.totalorder %s174, 0
    %s176 = scalar_select %p175, 0, 255
    %s177 = sand.u32 15, %s176
    %s178 = sand.u32 15, %s177
    %v179 = vld [vmem:[%s64] sm:%s178]
    %s180 = ssub.s32 0, %s65
    %v181 = vstv %s180
    %vm182 = vcmp.lt.s32.totalorder %v181, 0
    %v183 = vsel %vm182, %v9, %v179
    %v184 = vlaneseq
    %v185 = vshrl.u32 %v184, 7
    %vm187 = vcmp.lt.s32.totalorder %v185, 4
    %v188 = vsel %vm187, %v183, %v9
    %s189 = smul.addr %s65, 128
    %v190 = vlaneseq
    %v191 = vand.u32 %v190, 127
    %v192 = vstv %s189
    %v193 = vadd.s32 %v191, %v192
    %vm194 = vcmp.lt.s32.totalorder %v193, 8
    %v195 = vsel %vm194, %v188, %v9
    %s197 = ssub.s32 16, 1
    %198 = vst [vmem:[#allocation13] sm:%s197] %v195
    %s199 = scalar_lea.vmem %s64, 4
    %s200 = ssub.s32 0, %s65
    %p201 = scmp.lt.s32.totalorder %s200, 0
    %s202 = scalar_select %p201, 0, 255
    %s203 = sand.u32 15, %s202
    %s204 = sand.u32 15, %s203
    %v205 = vld [vmem:[%s199] sm:%s204]
    %s206 = ssub.s32 0, %s65
    %v207 = vstv %s206
    %vm208 = vcmp.lt.s32.totalorder %v207, 0
    %v209 = vsel %vm208, %v9, %v205
    %v210 = vlaneseq
    %v211 = vshrl.u32 %v210, 7
    %vm213 = vcmp.lt.s32.totalorder %v211, 4
    %v214 = vsel %vm213, %v209, %v9
    %s215 = smul.addr %s65, 128
    %v216 = vlaneseq
    %v217 = vand.u32 %v216, 127
    %v218 = vstv %s215
    %v219 = vadd.s32 %v217, %v218
    %vm220 = vcmp.lt.s32.totalorder %v219, 8
    %v221 = vsel %vm220, %v214, %v9
    %s222 = scalar_lea.vmem [#allocation13], 4
    %s224 = ssub.s32 16, 1
    %225 = vst [vmem:[%s222] sm:%s224] %v221
    %v226 = vld [vmem:[#allocation13] sm:$0xf]
    %v227 = vld [vmem:[#allocation13 + $0x4] sm:$0xf]
    %vm228 = vcmask 1043456
    %v229 = vsel %vm228, %v226, -inf
    %v230 = vrot.slane %v229, 4
    %v231 = vmax.f32 %v229, %v230
    %v232 = vrot.slane %v231, 2
    %v233 = vmax.f32 %v231, %v232
    %v234 = vrot.slane %v233, 1
    %v235 = vmax.f32 %v233, %v234
    %v236 = vsel %vm228, %v227, -inf
    %v237 = vrot.slane %v236, 4
    %v238 = vmax.f32 %v236, %v237
    %v239 = vrot.slane %v238, 2
    %v240 = vmax.f32 %v238, %v239
    %v241 = vrot.slane %v240, 1
    %v242 = vmax.f32 %v240, %v241
    %v243 = vsub.f32 %v226, %v235
    %v244 = vsub.f32 %v227, %v242
    %v245 = vmul.f32 %v243, 1.442695
    %v246 = vpow.pop %v245
    %v247 = vmul.f32 %v244, 1.442695
    %v248 = vpow.pop %v247
    %v249 = vsel %vm228, %v246, 0.0
    %v250 = vrot.slane %v249, 4
    %v251 = vadd.f32 %v249, %v250
    %v252 = vrot.slane %v251, 2
    %v253 = vadd.f32 %v251, %v252
    %v254 = vrot.slane %v253, 1
    %v255 = vadd.f32 %v253, %v254
    %v256 = vsel %vm228, %v248, 0.0
    %v257 = vrot.slane %v256, 4
    %v258 = vadd.f32 %v256, %v257
    %v259 = vrot.slane %v258, 2
    %v260 = vadd.f32 %v258, %v259
    %v261 = vrot.slane %v260, 1
    %v262 = vadd.f32 %v260, %v261
    %v263 = vrcp.pop %v255
    %v264 = vmul.f32 %v255, %v263
    %v265 = vsub.f32 1.0, %v264
    %v266 = vmul.f32 %v263, %v265
    %v267 = vadd.f32 %v263, %v266
    %vm268 = vweird.f32 %v255
    %vm269 = vweird.f32 %v263
    %vm270 = vmor %vm268, %vm269
    %v271 = vsel %vm270, %v263, %v267
    %v272 = vand.u32 2147483647, %v255
    %vm273 = vcmp.eq.f32.partialorder %v272, 8.507059e+37
    %v274 = vand.u32 %v255, 2147483648
    %v275 = vor.u32 1.1754944e-38, %v274
    %v276 = vsel %vm273, %v275, %v271
    %v277 = vmul.f32 1.0, %v276
    %v278 = vrcp.pop %v262
    %v279 = vmul.f32 %v262, %v278
    %v280 = vsub.f32 1.0, %v279
    %v281 = vmul.f32 %v278, %v280
    %v282 = vadd.f32 %v278, %v281
    %vm283 = vweird.f32 %v262
    %vm284 = vweird.f32 %v278
    %vm285 = vmor %vm283, %vm284
    %v286 = vsel %vm285, %v278, %v282
    %v287 = vand.u32 2147483647, %v262
    %vm288 = vcmp.eq.f32.partialorder %v287, 8.507059e+37
    %v289 = vand.u32 %v262, 2147483648
    %v290 = vor.u32 1.1754944e-38, %v289
    %v291 = vsel %vm288, %v290, %v286
    %v292 = vmul.f32 1.0, %v291
    %v293 = vmul.f32 %v246, %v277
    %v294 = vmul.f32 %v248, %v292
    %v295 = vlog2.pop %v255
    %v296 = vmul.f32 %v295, 0.6931472
    %v297 = vlog2.pop %v262
    %v298 = vmul.f32 %v297, 0.6931472
    %v299 = vsub.f32 %v243, %v296
    %v300 = vsub.f32 %v244, %v298
    %v301 = vmul.f32 %v293, %v299
    %v302 = vmul.f32 %v294, %v300
    %v303 = vsel %vm228, %v301, 0.0
    %v304 = vrot.slane %v303, 4
    %v305 = vadd.f32 %v303, %v304
    %v306 = vrot.slane %v305, 2
    %v307 = vadd.f32 %v305, %v306
    %v308 = vrot.slane %v307, 1
    %v309 = vadd.f32 %v307, %v308
    %v310 = vsel %vm228, %v302, 0.0
    %v311 = vrot.slane %v310, 4
    %v312 = vadd.f32 %v310, %v311
    %v313 = vrot.slane %v312, 2
    %v314 = vadd.f32 %v312, %v313
    %v315 = vrot.slane %v314, 1
    %v316 = vadd.f32 %v314, %v315
    %v317 = vld [vmem:[#allocation12] sm:$0xf]
    %v318 = vsel %vm228, %v317, -inf
    %v319 = vrot.slane %v318, 4
    %v320 = vmax.f32 %v318, %v319
    %v321 = vrot.slane %v320, 2
    %v322 = vmax.f32 %v320, %v321
    %v323 = vrot.slane %v322, 1
    %v324 = vmax.f32 %v322, %v323
    %v325 = vsub.f32 %v317, %v324
    %v326 = vmul.f32 %v325, 1.442695
    %v327 = vpow.pop %v326
    %v328 = vsel %vm228, %v327, 0.0
    %v329 = vrot.slane %v328, 4
    %v330 = vadd.f32 %v328, %v329
    %v331 = vrot.slane %v330, 2
    %v332 = vadd.f32 %v330, %v331
    %v333 = vrot.slane %v332, 1
    %v334 = vadd.f32 %v332, %v333
    %v335 = vlog2.pop %v334
    %v336 = vmul.f32 %v335, 0.6931472
    %v337 = vsub.f32 %v325, %v336
    %v338 = vperm.slane %v337, 0
    %v341 = vrot.slane %v294, 7
    %vm342 = vcmask 1041409
    %v343 = vsel %vm342, %v341, %v293
    %v345 = vmul.f32 %v338, %v343
    %v346 = vperm.slane %v337, 1
    %v347 = vrot.slane %v293, 1
    %v348 = vsel %vm342, %v294, %v347
    %v350 = vmul.f32 %v346, %v348
    %v351 = vadd.f32 %v345, %v350
    %v352 = vperm.slane %v337, 2
    %v353 = vrot.slane %v293, 2
    %v354 = vrot.slane %v294, 1
    %v355 = vsel %vm342, %v354, %v353
    %v357 = vmul.f32 %v352, %v355
    %v358 = vadd.f32 %v351, %v357
    %v359 = vperm.slane %v337, 3
    %v360 = vrot.slane %v293, 3
    %v361 = vrot.slane %v294, 2
    %v362 = vsel %vm342, %v361, %v360
    %v364 = vmul.f32 %v359, %v362
    %v365 = vadd.f32 %v358, %v364
    %v367 = vrot.slane %v365, 1
    %v370 = vsub.f32 %v309, %v365
    %v371 = vsub.f32 %v316, %v367
    %vm372 = vcmask 1040384
    %v373 = vsel %vm372, %v370, -inf
    %v374 = vsel %vm372, %v371, -inf
    %v375 = vmax.f32 %v373, %v374
    %v376 = vperm.slane %v375, 0
    %v377 = vsub.f32 %v370, %v376
    %v378 = vsub.f32 %v371, %v376
    %v379 = vmul.f32 %v377, 1.442695
    %v380 = vpow.pop %v379
    %v381 = vmul.f32 %v378, 1.442695
    %v382 = vpow.pop %v381
    %v383 = vmul.f32 %v380, %v370
    %v384 = vmul.f32 %v382, %v371
    %v387 = vrot.slane %v384, 7
    %v388 = vsel %vm342, %v387, %v383
    %vm390 = vcmask 1041408
    %v391 = vsel %vm390, %v388, 0.0
    %v392 = vrot.slane %v391, 4
    %v393 = vadd.f32 %v391, %v392
    %v394 = vrot.slane %v393, 2
    %v395 = vadd.f32 %v393, %v394
    %v396 = vrot.slane %v395, 1
    %v397 = vadd.f32 %v395, %v396
    %v400 = vrot.slane %v382, 7
    %v401 = vsel %vm342, %v400, %v380
    %v403 = vsel %vm390, %v401, 0.0
    %v404 = vrot.slane %v403, 4
    %v405 = vadd.f32 %v403, %v404
    %v406 = vrot.slane %v405, 2
    %v407 = vadd.f32 %v405, %v406
    %v408 = vrot.slane %v407, 1
    %v409 = vadd.f32 %v407, %v408
    %v410 = vrcp.pop %v409
    %v411 = vmul.f32 %v409, %v410
    %v412 = vsub.f32 1.0, %v411
    %v413 = vmul.f32 %v410, %v412
    %v414 = vadd.f32 %v410, %v413
    %vm415 = vweird.f32 %v409
    %vm416 = vweird.f32 %v410
    %vm417 = vmor %vm415, %vm416
    %v418 = vsel %vm417, %v410, %v414
    %v419 = vand.u32 2147483647, %v409
    %vm420 = vcmp.eq.f32.partialorder %v419, 8.507059e+37
    %v421 = vand.u32 %v409, 2147483648
    %v422 = vor.u32 1.1754944e-38, %v421
    %v423 = vsel %vm420, %v422, %v418
    %v424 = vmul.f32 %v397, %v423
    %v425 = vadd.f32 %v424, 0.0
    %s426 = scalar_lea.vmem [#allocation12], 4
    %v427 = vld [vmem:[%s426] sm:$0xf]
    %v428 = vsel %vm228, %v427, -inf
    %v429 = vrot.slane %v428, 4
    %v430 = vmax.f32 %v428, %v429
    %v431 = vrot.slane %v430, 2
    %v432 = vmax.f32 %v430, %v431
    %v433 = vrot.slane %v432, 1
    %v434 = vmax.f32 %v432, %v433
    %v435 = vsub.f32 %v427, %v434
    %v436 = vmul.f32 %v435, 1.442695
    %v437 = vpow.pop %v436
    %v438 = vsel %vm228, %v437, 0.0
    %v439 = vrot.slane %v438, 4
    %v440 = vadd.f32 %v438, %v439
    %v441 = vrot.slane %v440, 2
    %v442 = vadd.f32 %v440, %v441
    %v443 = vrot.slane %v442, 1
    %v444 = vadd.f32 %v442, %v443
    %v445 = vlog2.pop %v444
    %v446 = vmul.f32 %v445, 0.6931472
    %v447 = vsub.f32 %v435, %v446
    %v448 = vperm.slane %v447, 0
    %v449 = vmul.f32 %v448, %v343
    %v450 = vperm.slane %v447, 1
    %v451 = vmul.f32 %v450, %v348
    %v452 = vadd.f32 %v449, %v451
    %v453 = vperm.slane %v447, 2
    %v454 = vmul.f32 %v453, %v355
    %v455 = vadd.f32 %v452, %v454
    %v456 = vperm.slane %v447, 3
    %v457 = vmul.f32 %v456, %v362
    %v458 = vadd.f32 %v455, %v457
    %v460 = vrot.slane %v458, 1
    %v463 = vsub.f32 %v309, %v458
    %v464 = vsub.f32 %v316, %v460
    %v465 = vsel %vm372, %v463, -inf
    %v466 = vsel %vm372, %v464, -inf
    %v467 = vmax.f32 %v465, %v466
    %v468 = vperm.slane %v467, 0
    %v469 = vsub.f32 %v463, %v468
    %v470 = vsub.f32 %v464, %v468
    %v471 = vmul.f32 %v469, 1.442695
    %v472 = vpow.pop %v471
    %v473 = vmul.f32 %v470, 1.442695
    %v474 = vpow.pop %v473
    %v475 = vmul.f32 %v472, %v463
    %v476 = vmul.f32 %v474, %v464
    %v479 = vrot.slane %v476, 7
    %v480 = vsel %vm342, %v479, %v475
    %v482 = vsel %vm390, %v480, 0.0
    %v483 = vrot.slane %v482, 4
    %v484 = vadd.f32 %v482, %v483
    %v485 = vrot.slane %v484, 2
    %v486 = vadd.f32 %v484, %v485
    %v487 = vrot.slane %v486, 1
    %v488 = vadd.f32 %v486, %v487
    %v491 = vrot.slane %v474, 7
    %v492 = vsel %vm342, %v491, %v472
    %v494 = vsel %vm390, %v492, 0.0
    %v495 = vrot.slane %v494, 4
    %v496 = vadd.f32 %v494, %v495
    %v497 = vrot.slane %v496, 2
    %v498 = vadd.f32 %v496, %v497
    %v499 = vrot.slane %v498, 1
    %v500 = vadd.f32 %v498, %v499
    %v501 = vrcp.pop %v500
    %v502 = vmul.f32 %v500, %v501
    %v503 = vsub.f32 1.0, %v502
    %v504 = vmul.f32 %v501, %v503
    %v505 = vadd.f32 %v501, %v504
    %vm506 = vweird.f32 %v500
    %vm507 = vweird.f32 %v501
    %vm508 = vmor %vm506, %vm507
    %v509 = vsel %vm508, %v501, %v505
    %v510 = vand.u32 2147483647, %v500
    %vm511 = vcmp.eq.f32.partialorder %v510, 8.507059e+37
    %v512 = vand.u32 %v500, 2147483648
    %v513 = vor.u32 1.1754944e-38, %v512
    %v514 = vsel %vm511, %v513, %v509
    %v515 = vmul.f32 %v488, %v514
    %v516 = vadd.f32 %v425, %v515
    %s517 = scalar_lea.vmem [#allocation12], 8
    %v518 = vld [vmem:[%s517] sm:$0xf]
    %v519 = vsel %vm228, %v518, -inf
    %v520 = vrot.slane %v519, 4
    %v521 = vmax.f32 %v519, %v520
    %v522 = vrot.slane %v521, 2
    %v523 = vmax.f32 %v521, %v522
    %v524 = vrot.slane %v523, 1
    %v525 = vmax.f32 %v523, %v524
    %v526 = vsub.f32 %v518, %v525
    %v527 = vmul.f32 %v526, 1.442695
    %v528 = vpow.pop %v527
    %v529 = vsel %vm228, %v528, 0.0
    %v530 = vrot.slane %v529, 4
    %v531 = vadd.f32 %v529, %v530
    %v532 = vrot.slane %v531, 2
    %v533 = vadd.f32 %v531, %v532
    %v534 = vrot.slane %v533, 1
    %v535 = vadd.f32 %v533, %v534
    %v536 = vlog2.pop %v535
    %v537 = vmul.f32 %v536, 0.6931472
    %v538 = vsub.f32 %v526, %v537
    %v539 = vperm.slane %v538, 0
    %v540 = vmul.f32 %v539, %v343
    %v541 = vperm.slane %v538, 1
    %v542 = vmul.f32 %v541, %v348
    %v543 = vadd.f32 %v540, %v542
    %v544 = vperm.slane %v538, 2
    %v545 = vmul.f32 %v544, %v355
    %v546 = vadd.f32 %v543, %v545
    %v547 = vperm.slane %v538, 3
    %v548 = vmul.f32 %v547, %v362
    %v549 = vadd.f32 %v546, %v548
    %v551 = vrot.slane %v549, 1
    %v554 = vsub.f32 %v309, %v549
    %v555 = vsub.f32 %v316, %v551
    %v556 = vsel %vm372, %v554, -inf
    %v557 = vsel %vm372, %v555, -inf
    %v558 = vmax.f32 %v556, %v557
    %v559 = vperm.slane %v558, 0
    %v560 = vsub.f32 %v554, %v559
    %v561 = vsub.f32 %v555, %v559
    %v562 = vmul.f32 %v560, 1.442695
    %v563 = vpow.pop %v562
    %v564 = vmul.f32 %v561, 1.442695
    %v565 = vpow.pop %v564
    %v566 = vmul.f32 %v563, %v554
    %v567 = vmul.f32 %v565, %v555
    %v570 = vrot.slane %v567, 7
    %v571 = vsel %vm342, %v570, %v566
    %v573 = vsel %vm390, %v571, 0.0
    %v574 = vrot.slane %v573, 4
    %v575 = vadd.f32 %v573, %v574
    %v576 = vrot.slane %v575, 2
    %v577 = vadd.f32 %v575, %v576
    %v578 = vrot.slane %v577, 1
    %v579 = vadd.f32 %v577, %v578
    %v582 = vrot.slane %v565, 7
    %v583 = vsel %vm342, %v582, %v563
    %v585 = vsel %vm390, %v583, 0.0
    %v586 = vrot.slane %v585, 4
    %v587 = vadd.f32 %v585, %v586
    %v588 = vrot.slane %v587, 2
    %v589 = vadd.f32 %v587, %v588
    %v590 = vrot.slane %v589, 1
    %v591 = vadd.f32 %v589, %v590
    %v592 = vrcp.pop %v591
    %v593 = vmul.f32 %v591, %v592
    %v594 = vsub.f32 1.0, %v593
    %v595 = vmul.f32 %v592, %v594
    %v596 = vadd.f32 %v592, %v595
    %vm597 = vweird.f32 %v591
    %vm598 = vweird.f32 %v592
    %vm599 = vmor %vm597, %vm598
    %v600 = vsel %vm599, %v592, %v596
    %v601 = vand.u32 2147483647, %v591
    %vm602 = vcmp.eq.f32.partialorder %v601, 8.507059e+37
    %v603 = vand.u32 %v591, 2147483648
    %v604 = vor.u32 1.1754944e-38, %v603
    %v605 = vsel %vm602, %v604, %v600
    %v606 = vmul.f32 %v579, %v605
    %v607 = vadd.f32 %v516, %v606
    %s608 = scalar_lea.vmem [#allocation12], 12
    %v609 = vld [vmem:[%s608] sm:$0xf]
    %v610 = vsel %vm228, %v609, -inf
    %v611 = vrot.slane %v610, 4
    %v612 = vmax.f32 %v610, %v611
    %v613 = vrot.slane %v612, 2
    %v614 = vmax.f32 %v612, %v613
    %v615 = vrot.slane %v614, 1
    %v616 = vmax.f32 %v614, %v615
    %v617 = vsub.f32 %v609, %v616
    %v618 = vmul.f32 %v617, 1.442695
    %v619 = vpow.pop %v618
    %v620 = vsel %vm228, %v619, 0.0
    %v621 = vrot.slane %v620, 4
    %v622 = vadd.f32 %v620, %v621
    %v623 = vrot.slane %v622, 2
    %v624 = vadd.f32 %v622, %v623
    %v625 = vrot.slane %v624, 1
    %v626 = vadd.f32 %v624, %v625
    %v627 = vlog2.pop %v626
    %v628 = vmul.f32 %v627, 0.6931472
    %v629 = vsub.f32 %v617, %v628
    %v630 = vperm.slane %v629, 0
    %v631 = vmul.f32 %v630, %v343
    %v632 = vperm.slane %v629, 1
    %v633 = vmul.f32 %v632, %v348
    %v634 = vadd.f32 %v631, %v633
    %v635 = vperm.slane %v629, 2
    %v636 = vmul.f32 %v635, %v355
    %v637 = vadd.f32 %v634, %v636
    %v638 = vperm.slane %v629, 3
    %v639 = vmul.f32 %v638, %v362
    %v640 = vadd.f32 %v637, %v639
    %v642 = vrot.slane %v640, 1
    %v645 = vsub.f32 %v309, %v640
    %v646 = vsub.f32 %v316, %v642
    %v647 = vsel %vm372, %v645, -inf
    %v648 = vsel %vm372, %v646, -inf
    %v649 = vmax.f32 %v647, %v648
    %v650 = vperm.slane %v649, 0
    %v651 = vsub.f32 %v645, %v650
    %v652 = vsub.f32 %v646, %v650
    %v653 = vmul.f32 %v651, 1.442695
    %v654 = vpow.pop %v653
    %v655 = vmul.f32 %v652, 1.442695
    %v656 = vpow.pop %v655
    %v657 = vmul.f32 %v654, %v645
    %v658 = vmul.f32 %v656, %v646
    %v661 = vrot.slane %v658, 7
    %v662 = vsel %vm342, %v661, %v657
    %v664 = vsel %vm390, %v662, 0.0
    %v665 = vrot.slane %v664, 4
    %v666 = vadd.f32 %v664, %v665
    %v667 = vrot.slane %v666, 2
    %v668 = vadd.f32 %v666, %v667
    %v669 = vrot.slane %v668, 1
    %v670 = vadd.f32 %v668, %v669
    %v673 = vrot.slane %v656, 7
    %v674 = vsel %vm342, %v673, %v654
    %v676 = vsel %vm390, %v674, 0.0
    %v677 = vrot.slane %v676, 4
    %v678 = vadd.f32 %v676, %v677
    %v679 = vrot.slane %v678, 2
    %v680 = vadd.f32 %v678, %v679
    %v681 = vrot.slane %v680, 1
    %v682 = vadd.f32 %v680, %v681
    %v683 = vrcp.pop %v682
    %v684 = vmul.f32 %v682, %v683
    %v685 = vsub.f32 1.0, %v684
    %v686 = vmul.f32 %v683, %v685
    %v687 = vadd.f32 %v683, %v686
    %vm688 = vweird.f32 %v682
    %vm689 = vweird.f32 %v683
    %vm690 = vmor %vm688, %vm689
    %v691 = vsel %vm690, %v683, %v687
    %v692 = vand.u32 2147483647, %v682
    %vm693 = vcmp.eq.f32.partialorder %v692, 8.507059e+37
    %v694 = vand.u32 %v682, 2147483648
    %v695 = vor.u32 1.1754944e-38, %v694
    %v696 = vsel %vm693, %v695, %v691
    %v697 = vmul.f32 %v670, %v696
    %v698 = vadd.f32 %v607, %v697
    %p699 = scmp.eq.s32.totalorder 0, 0
    // Predicated region
    $region10: #{kl_distance_loss.2} parent=1 // pred_check
      %p700 = pneg %p699
    $region11: #{kl_distance_loss.2} parent=1 // pred_check_branch
      %702 = sbr.rel (%p700) target = $region13
    $region12: #{kl_distance_loss.2} parent=1 // pred_region
      %703 = vst [vmem:[%s3] sm:$0x1] 0.0
    $region13: #{kl_distance_loss.2} parent=1 // pred_fallthru
      _
    %v704 = vld [vmem:[%s3] sm:$0x1]
    %v705 = vadd.f32 %v704, %v698
    %706 = vst [vmem:[%s3] sm:$0x1] %v705
    // Predicated region
    $region14: #{kl_distance_loss.2} parent=1 // pred_check
      _
    $region15: #{kl_distance_loss.2} parent=1 // pred_check_branch
      %708 = sbr.rel (0) target = $region17
    $region16: #{kl_distance_loss.2} parent=1 // pred_region
      _
    $region17: #{kl_distance_loss.2} parent=1 // pred_fallthru
      _
    // Predicated region
    $region18: #{kl_distance_loss.2} parent=1 // pred_check
      _
    $region19: #{kl_distance_loss.2} parent=1 // pred_check_branch
      %710 = sbr.rel (0) target = $region21
    $region20: #{kl_distance_loss.2} parent=1 // pred_region
      _
    $region21: #{kl_distance_loss.2} parent=1 // pred_fallthru
      _

</llo_original>
